<compile_context>
chip_gen: v5e
topology: v5e:2x2
jax: 0.10.0
libtpu: 0.0.40
codegen_flags: <defaults>
</compile_context>

<pallas_src>
import jax
import jax.numpy as jnp
from jax.experimental import pallas as pl
from jax.experimental.pallas import tpu as pltpu


def _round_up(x, m):
    return ((x + m - 1) // m) * m


def _linlayer_kernel_skip(x_ref, w_ref, v_ref, sc_ref, o_ref):
    # v_ref rows: 0 = bias, 1 = S (bn1*bn2 scale), 2 = B (shift), 3 = s2.
    w = w_ref[...]
    h = jnp.dot(x_ref[...].astype(w.dtype), w,
                preferred_element_type=jnp.float32)
    h = jnp.maximum(h + v_ref[0:1, :], 0.0)             # Linear bias + ReLU
    y = (h * v_ref[1:2, :]
         + sc_ref[...].astype(jnp.float32) * v_ref[3:4, :]
         + v_ref[2:3, :])
    o_ref[...] = y.astype(o_ref.dtype)


def _linlayer_kernel_noskip(x_ref, w_ref, v_ref, o_ref):
    w = w_ref[...]
    h = jnp.dot(x_ref[...].astype(w.dtype), w,
                preferred_element_type=jnp.float32)
    h = jnp.maximum(h + v_ref[0:1, :], 0.0)
    o_ref[...] = (h * v_ref[1:2, :] + v_ref[2:3, :]).astype(o_ref.dtype)


def lin_layer(x, sc, params, *, skip=True, tm=2048,
              compute_dtype=jnp.bfloat16, out_dtype=None):
    """Fused LinLayer forward (eval-mode semantics).

    x:  (N, in_chn)   — pass bf16 to halve HBM read traffic
    sc: (N, out_chn)  — only read/DMA'd when skip=True
    params: W (in,out), b, bn1/bn2 gamma/beta/mean/var (out,)
    tm: packed-row tile size (sweep 1024..4096; v7x likes the high end).
    compute_dtype: matmul operand dtype (f32 accumulation regardless).
    out_dtype: output dtype (default: x.dtype).
    """
    N, in_chn = x.shape
    out_chn = params["W"].shape[1]
    out_dtype = x.dtype if out_dtype is None else out_dtype
    eps = 1e-3  # BatchNorm1d(eps=0.001)
    f32 = jnp.float32

    # Fold BN running stats into scale/shift, then fold the two BNs.
    def fold(g, be, m, v):
        s = g.astype(f32) / jnp.sqrt(v.astype(f32) + eps)
        return s, be.astype(f32) - m.astype(f32) * s

    s1, t1 = fold(params["bn1_gamma"], params["bn1_beta"],
                  params["bn1_mean"], params["bn1_var"])
    s2, t2 = fold(params["bn2_gamma"], params["bn2_beta"],
                  params["bn2_mean"], params["bn2_var"])
    S = s1 * s2            # combined scale on relu(xW+b)
    B = t1 * s2 + t2       # combined shift
    b = params["b"].astype(f32)
    W = params["W"].astype(f32)

    # ---- Lane-dense output layout --------------------------------------
    if out_chn < 128 and 128 % out_chn == 0:
        pf, lane_pad = 128 // out_chn, 0     # fold pf rows into the lane axis
    else:
        pf, lane_pad = 1, (-out_chn) % 128   # pad output lanes to 128-multiple
    out_w = pf * out_chn + lane_pad
    in_w = pf * in_chn

    if pf > 1:
        # Exact block-diagonal weight: packed (tm, pf*in) @ (pf*in, pf*out).
        W_p = jnp.kron(jnp.eye(pf, dtype=f32), W)
        expand = lambda v: jnp.tile(v, pf)
    else:
        W_p = jnp.pad(W, ((0, 0), (0, lane_pad)))
        expand = lambda v: jnp.pad(v, (0, lane_pad))
    W_p = W_p.astype(compute_dtype)

    vec_rows = [expand(b), expand(S), expand(B)] + ([expand(s2)] if skip else [])
    vecs = jnp.stack(vec_rows, axis=0)        # (3|4, out_w) f32, one operand

    # ---- Row packing (free reshape; only a tiny pad for a ragged tail) --
    pad_n = (-N) % pf
    if pad_n:
        # Tiny (< pf rows) tail pad; callers that care should supply
        # N as a multiple of pf == 128 // out_chn to make this a no-op.
        x = jnp.pad(x, ((0, pad_n), (0, 0)))
        if skip:
            sc = jnp.pad(sc, ((0, pad_n), (0, 0)))
    if skip and lane_pad:
        sc = jnp.pad(sc, ((0, 0), (0, lane_pad)))   # pf==1 fallback only
    rows = (N + pad_n) // pf
    x_p = x.reshape(rows, in_w)
    sc_p = sc.reshape(rows, out_w) if skip else None

    # ---- Row tiling: balanced blocks, >= 2 grid steps for v7x megacore --
    min_blk = 8
    if rows <= min_blk:
        tm_eff, nblk = rows, 1                # tiny batch: one full-dim block
    else:
        nblk = max(pl.cdiv(rows, tm), 2 if rows >= 2 * min_blk else 1)
        tm_eff = _round_up(pl.cdiv(rows, nblk), min_blk)
        nblk = pl.cdiv(rows, tm_eff)          # last block may be partial (masked)

    vec_spec = pl.BlockSpec(vecs.shape, lambda i: (0, 0))
    in_specs = [
        pl.BlockSpec((tm_eff, in_w), lambda i: (i, 0)),    # x tile
        pl.BlockSpec(W_p.shape, lambda i: (0, 0)),         # weight (resident)
        vec_spec,                                          # b / S / B (/ s2)
    ]
    args = [x_p, W_p, vecs]
    if skip:
        in_specs.append(pl.BlockSpec((tm_eff, out_w), lambda i: (i, 0)))
        args.append(sc_p)
        kernel = _linlayer_kernel_skip
    else:
        kernel = _linlayer_kernel_noskip       # sc neither passed nor DMA'd

    out_packed = pl.pallas_call(
        kernel,
        out_shape=jax.ShapeDtypeStruct((rows, out_w), out_dtype),
        grid_spec=pl.GridSpec(
            grid=(nblk,),
            in_specs=in_specs,
            out_specs=pl.BlockSpec((tm_eff, out_w), lambda i: (i, 0)),
        ),
        compiler_params=pltpu.CompilerParams(
            dimension_semantics=("parallel",),
            vmem_limit_bytes=32 * 1024 * 1024,
        ),
    )(*args)

    if pf > 1:
        return out_packed.reshape(rows * pf, out_chn)[:N]
    return out_packed[:N, :out_chn]


def _reference(x, sc, params, *, skip=True):
    eps = 1e-3
    h = x @ params["W"] + params["b"]
    h = jnp.maximum(h, 0.0)
    h = (h - params["bn1_mean"]) / jnp.sqrt(params["bn1_var"] + eps)
    h = h * params["bn1_gamma"] + params["bn1_beta"]
    if skip:
        h = h + sc
    h = (h - params["bn2_mean"]) / jnp.sqrt(params["bn2_var"] + eps)
    return h * params["bn2_gamma"] + params["bn2_beta"]


def _make_params(key, in_chn, out_chn):
    ks = jax.random.split(key, 10)
    return {
        # torch Linear stores (out,in); pre-transposed to (in,out) for x @ W.
        "W": jax.random.normal(ks[0], (in_chn, out_chn), jnp.float32) * 0.1,
        "b": jax.random.normal(ks[1], (out_chn,), jnp.float32) * 0.1,
        "bn1_gamma": 1.0 + 0.1 * jax.random.normal(ks[2], (out_chn,), jnp.float32),
        "bn1_beta": 0.1 * jax.random.normal(ks[3], (out_chn,), jnp.float32),
        "bn1_mean": 0.1 * jax.random.normal(ks[4], (out_chn,), jnp.float32),
        "bn1_var": 0.5 + jnp.abs(jax.random.normal(ks[5], (out_chn,), jnp.float32)),
        "bn2_gamma": 1.0 + 0.1 * jax.random.normal(ks[6], (out_chn,), jnp.float32),
        "bn2_beta": 0.1 * jax.random.normal(ks[7], (out_chn,), jnp.float32),
        "bn2_mean": 0.1 * jax.random.normal(ks[8], (out_chn,), jnp.float32),
        "bn2_var": 0.5 + jnp.abs(jax.random.normal(ks[9], (out_chn,), jnp.float32)),
    }


if __name__ == "__main__":
    N, in_chn, out_chn = 128, 64, 32
    key = jax.random.PRNGKey(0)
    kp, kx, ks_, kp2 = jax.random.split(key, 4)
    params = _make_params(kp, in_chn, out_chn)
    x32 = jax.random.normal(kx, (N, in_chn), jnp.float32)
    sc32 = jax.random.normal(ks_, (N, out_chn), jnp.float32)

    # (1) Exactness: f32 inputs, f32 matmul operands (skip=True, pf=4 packing).
    out = jax.block_until_ready(
        lin_layer(x32, sc32, params, skip=True, compute_dtype=jnp.float32))
    ref = _reference(x32, sc32, params, skip=True)
    assert out.shape == (N, out_chn)
    assert jnp.allclose(out, ref, atol=1e-4, rtol=1e-4), "mismatch (f32)"

    # (2) Intended fast path: bf16 inputs/outputs, bf16 matmul, f32 accum.
    xb, scb = x32.astype(jnp.bfloat16), sc32.astype(jnp.bfloat16)
    out_bf = jax.block_until_ready(lin_layer(xb, scb, params, skip=True))
    ref_bf = _reference(xb.astype(jnp.float32), scb.astype(jnp.float32),
                        params, skip=True)
    assert out_bf.dtype == jnp.bfloat16
    assert jnp.allclose(out_bf.astype(jnp.float32), ref_bf,
                        atol=8e-2, rtol=8e-2), "mismatch (bf16)"

    # (3) No-skip path (sc not passed / not DMA'd).
    out_ns = jax.block_until_ready(lin_layer(xb, scb, params, skip=False))
    ref_ns = _reference(xb.astype(jnp.float32), None, params, skip=False)
    assert jnp.allclose(out_ns.astype(jnp.float32), ref_ns,
                        atol=8e-2, rtol=8e-2), "mismatch (no-skip)"

    # (4) Ragged batch: exercises the tiny pf tail pad + masked partial block.
    Nr = 99
    out_r = jax.block_until_ready(lin_layer(xb[:Nr], scb[:Nr], params, skip=True))
    assert out_r.shape == (Nr, out_chn)
    assert jnp.allclose(out_r.astype(jnp.float32), ref_bf[:Nr],
                        atol=8e-2, rtol=8e-2), "mismatch (ragged)"

    # (5) pf=1 fallback with output-lane padding (out_chn=48 not a divisor of 128).
    N2, in2, out2 = 64, 64, 48
    params2 = _make_params(kp2, in2, out2)
    x2 = jax.random.normal(jax.random.PRNGKey(1), (N2, in2), jnp.float32)
    sc2 = jax.random.normal(jax.random.PRNGKey(2), (N2, out2), jnp.float32)
    out2_ = jax.block_until_ready(
        lin_layer(x2, sc2, params2, skip=True, compute_dtype=jnp.float32))
    ref2_ = _reference(x2, sc2, params2, skip=True)
    assert out2_.shape == (N2, out2)
    assert jnp.allclose(out2_, ref2_, atol=1e-4, rtol=1e-4), "mismatch (lane-pad)"

    print("KERNEL_OK")
</pallas_src>

<mosaic_0001>
module attributes {stable_mosaic.version = 11 : i64} {
  func.func @_linlayer_kernel_skip(%arg0: i32, %arg1: memref<16x256xf32, #tpu.memory_space<vmem>>, %arg2: memref<256x128xf32, #tpu.memory_space<vmem>>, %arg3: memref<4x128xf32, #tpu.memory_space<vmem>>, %arg4: memref<16x128xf32, #tpu.memory_space<vmem>>, %arg5: memref<16x128xf32, #tpu.memory_space<vmem>>) attributes {dimension_semantics = [#tpu.dimension_semantics<parallel>], iteration_bounds = array<i64: 2>, scalar_prefetch = 0 : i64, scratch_operands = 0 : i64, tpu.core_type = #tpu.core_type<tc>, window_params = [{transform_indices = @transform_0, window_bounds = array<i64: 16, 256>}, {pipeline_mode = #tpu.pipeline_mode<synchronous>, transform_indices = @transform_1, window_bounds = array<i64: 256, 128>}, {pipeline_mode = #tpu.pipeline_mode<synchronous>, transform_indices = @transform_2, window_bounds = array<i64: 4, 128>}, {transform_indices = @transform_3, window_bounds = array<i64: 16, 128>}, {transform_indices = @transform_4, window_bounds = array<i64: 16, 128>}]} {
    %c0 = arith.constant 0 : index
    %c0_0 = arith.constant 0 : index
    %0 = vector.load %arg2[%c0, %c0_0] : memref<256x128xf32, #tpu.memory_space<vmem>>, vector<256x128xf32>
    %c0_1 = arith.constant 0 : index
    %c0_2 = arith.constant 0 : index
    %1 = vector.load %arg1[%c0_1, %c0_2] : memref<16x256xf32, #tpu.memory_space<vmem>>, vector<16x256xf32>
    %cst = arith.constant dense<0.000000e+00> : vector<16x128xf32>
    %2 = tpu.matmul %1, %0, %cst {dimension_numbers = #tpu.dot_dimension_numbers<[1], [0], [0], [1], [0, 0, 1, 1], [], []>} : vector<16x256xf32>, vector<256x128xf32>, vector<16x128xf32> -> vector<16x128xf32>
    %c0_3 = arith.constant 0 : index
    %c0_4 = arith.constant 0 : index
    %3 = vector.load %arg3[%c0_3, %c0_4] : memref<4x128xf32, #tpu.memory_space<vmem>>, vector<1x128xf32>
    %4 = vector.broadcast %3 : vector<1x128xf32> to vector<16x128xf32>
    %5 = arith.addf %2, %4 : vector<16x128xf32>
    %cst_5 = arith.constant 0.000000e+00 : f32
    %6 = vector.broadcast %cst_5 : f32 to vector<16x128xf32>
    %7 = arith.maximumf %5, %6 : vector<16x128xf32>
    %c1 = arith.constant 1 : index
    %c0_6 = arith.constant 0 : index
    %8 = vector.load %arg3[%c1, %c0_6] : memref<4x128xf32, #tpu.memory_space<vmem>>, vector<1x128xf32>
    %9 = vector.broadcast %8 : vector<1x128xf32> to vector<16x128xf32>
    %10 = arith.mulf %7, %9 : vector<16x128xf32>
    %c0_7 = arith.constant 0 : index
    %c0_8 = arith.constant 0 : index
    %11 = vector.load %arg4[%c0_7, %c0_8] : memref<16x128xf32, #tpu.memory_space<vmem>>, vector<16x128xf32>
    %c3 = arith.constant 3 : index
    %c0_9 = arith.constant 0 : index
    %12 = vector.load %arg3[%c3, %c0_9] : memref<4x128xf32, #tpu.memory_space<vmem>>, vector<1x128xf32>
    %13 = vector.broadcast %12 : vector<1x128xf32> to vector<16x128xf32>
    %14 = arith.mulf %11, %13 : vector<16x128xf32>
    %15 = arith.addf %10, %14 : vector<16x128xf32>
    %c2 = arith.constant 2 : index
    %c0_10 = arith.constant 0 : index
    %16 = vector.load %arg3[%c2, %c0_10] : memref<4x128xf32, #tpu.memory_space<vmem>>, vector<1x128xf32>
    %17 = vector.broadcast %16 : vector<1x128xf32> to vector<16x128xf32>
    %18 = arith.addf %15, %17 : vector<16x128xf32>
    %c0_11 = arith.constant 0 : index
    %c0_12 = arith.constant 0 : index
    %19 = vector.load %arg5[%c0_11, %c0_12] : memref<16x128xf32, #tpu.memory_space<vmem>>, vector<16x128xf32>
    tpu.vector_store %arg5[%c0_11, %c0_12], %18 {strides = array<i32>} : memref<16x128xf32, #tpu.memory_space<vmem>>, vector<16x128xf32>,
    return
  }
  func.func @transform_0(%arg0: i32) -> (i32, i32) {
    %c0_i32 = arith.constant 0 : i32
    %c0_i32_0 = arith.constant 0 : i32
    return %arg0, %c0_i32 : i32, i32
  }
  func.func @transform_1(%arg0: i32) -> (i32, i32) {
    %c0_i32 = arith.constant 0 : i32
    %c0_i32_0 = arith.constant 0 : i32
    %c0_i32_1 = arith.constant 0 : i32
    return %c0_i32, %c0_i32_0 : i32, i32
  }
  func.func @transform_2(%arg0: i32) -> (i32, i32) {
    %c0_i32 = arith.constant 0 : i32
    %c0_i32_0 = arith.constant 0 : i32
    %c0_i32_1 = arith.constant 0 : i32
    return %c0_i32, %c0_i32_0 : i32, i32
  }
  func.func @transform_3(%arg0: i32) -> (i32, i32) {
    %c0_i32 = arith.constant 0 : i32
    %c0_i32_0 = arith.constant 0 : i32
    return %arg0, %c0_i32 : i32, i32
  }
  func.func @transform_4(%arg0: i32) -> (i32, i32) {
    %c0_i32 = arith.constant 0 : i32
    %c0_i32_0 = arith.constant 0 : i32
    return %arg0, %c0_i32 : i32, i32
  }
}

</mosaic_0001>

<llo_original>
// kernel: tpu_custom_call.1
$region0: #{tpu_custom_call.1}
  #allocation0 [shape = 'u32[]', space=smem, size = 0x4, offset = 0x4, fixed_abs, tag = 'smem constant byte address 0x4 - core index']
  #allocation1 [shape = 'u32[72,128]{1,0:T(1,128)}', space=vmem, size = 0x9000, scoped, tag = 'internal scratch']
  %s0 = inlined_call_operand.hbm [shape: f32[32,256], index: 0, kind: input, shape index: {}]
  %s1 = inlined_call_operand.hbm [shape: f32[256,128], index: 1, kind: input, shape index: {}]
  %s2 = inlined_call_operand.hbm [shape: f32[4,128], index: 2, kind: input, shape index: {}]
  %s3 = inlined_call_operand.hbm [shape: f32[32,128], index: 3, kind: input, shape index: {}]
  %s4 = inlined_call_operand.hbm [shape: f32[32,128], index: 4, kind: output, shape index: {}]
  %s5 = sld [smem:[#allocation0]]
  $region65: #{tpu_custom_call.1} parent=0
    _
  %s7 = ssub.s32 1, %s5
  %s8 = scalar_select 0, %s7, %s5
  $region1: #{tpu_custom_call.1} parent=0
    #allocation2 [shape = 'u8[32768]{0}', space=vmem, size = 0x8000, scoped, tag = 'input window, operand 0']
    #allocation3 [shape = 's32[2]{0}', space=sflag, size = 0x8, scoped, tag = 'scoped memory for tpu_custom_call.1']
    #allocation4 [shape = 's32[2]{0}', space=sflag, size = 0x8, scoped, tag = 'scoped memory for tpu_custom_call.1']
    #allocation5 [shape = 'u8[131072]{0}', space=vmem, size = 0x20000, scoped, tag = 'input window, operand 1, single buffered']
    #allocation6 [shape = 's32[1]{0}', space=sflag, size = 0x4, scoped, tag = 'scoped memory for tpu_custom_call.1']
    #allocation7 [shape = 'u8[2048]{0}', space=vmem, size = 0x800, scoped, tag = 'input window, operand 2, single buffered']
    #allocation8 [shape = 'u8[16384]{0}', space=vmem, size = 0x4000, scoped, tag = 'input window, operand 3']
    #allocation9 [shape = 's32[2]{0}', space=sflag, size = 0x8, scoped, tag = 'scoped memory for tpu_custom_call.1']
    #allocation10 [shape = 'u8[16384]{0}', space=vmem, size = 0x4000, scoped, tag = 'output window, operand 0']
    %9 = vsyncpa [#allocation3], 0
    %s10 = scalar_lea.sflag [#allocation3], 1
    %11 = vsyncpa %s10, 0
    %12 = vsyncpa [#allocation6], 0
    %13 = vsyncpa [#allocation9], 0
    %s14 = scalar_lea.sflag [#allocation9], 1
    %15 = vsyncpa %s14, 0
    %16 = vsyncpa [#allocation4], 0
    %s17 = scalar_lea.sflag [#allocation4], 1
    %18 = vsyncpa %s17, 0
    loop: start=0, step=1, limit=4
    $region2: #{tpu_custom_call.1} parent=1 // loop_pre_header
      _
    $region3: #{tpu_custom_call.1} parent=1 // loop_header
      %s20 = sphi 0, %s24
      %p21 = scmp.ge.s32.totalorder %s20, 4
      %s30 = sphi 0, %s32
      %s33 = sphi 0, %s30
      %s34 = sphi 0, %s33
      %s50 = sphi 0, %s34
      %s54 = sphi 0, %s54
      %s56 = sphi 0, %s54
      %s57 = sphi 0, %s56
      %s71 = sphi 0, %s57
      %s75 = sphi 0, %s75
      %s77 = sphi 0, %s75
      %s78 = sphi 0, %s77
      %s92 = sphi 0, %s78
      %s98 = sphi 0, %s100
      %s101 = sphi 0, %s98
      %s102 = sphi 0, %s101
      %s118 = sphi 0, %s102
      %s124 = sphi 0, %s126
      %s127 = sphi 0, %s124
      %s128 = sphi 0, %s127
      %s144 = sphi 0, %s128
    $region4: #{tpu_custom_call.1} parent=1 // loop_header_branch
      %23 = sbr.rel (%p21) target = $region8
    $region5: #{tpu_custom_call.1} parent=1 // loop_body
      %s25 = ssub.s32 %s20, 1
      %s26 = ssub.s32 %s20, 2
      %s27 = sadd.s32 %s20, 1
      %s28 = ssub.s32 %s20, %s27
      %p29 = scmp.eq.s32.totalorder %s28, 0
      %s31 = sadd.s32 %s30, 1
      %s32 = scalar_select %p29, %s30, %s31
      %p35 = pneg %p29
      %p36 = scmp.eq.s32.totalorder %s20, 1
      %p37 = por %p35, %p36
      %p38 = scmp.ne.s32.totalorder %s30, %s33
      %p39 = scmp.eq.s32.totalorder %s20, 0
      %p40 = por %p38, %p39
      %p41 = scmp.ne.s32.totalorder %s30, %s33
      %p42 = scmp.eq.s32.totalorder %s25, 1
      %p43 = por %p41, %p42
      %p44 = scmp.ne.s32.totalorder %s33, %s34
      %p45 = scmp.eq.s32.totalorder %s25, 0
      %p46 = por %p44, %p45
      %p47 = scmp.ne.s32.totalorder %s33, %s34
      %p48 = scmp.eq.s32.totalorder %s26, 1
      %p49 = por %p47, %p48
      %p51 = scmp.ne.s32.totalorder %s34, %s50
      %p52 = scmp.eq.s32.totalorder %s26, 0
      %p53 = por %p51, %p52
      %s55 = sadd.s32 %s54, 1
      %p58 = scmp.eq.s32.totalorder %s20, 1
      %p59 = scmp.ne.s32.totalorder %s54, %s56
      %p60 = scmp.eq.s32.totalorder %s20, 0
      %p61 = por %p59, %p60
      %p62 = scmp.ne.s32.totalorder %s54, %s56
      %p63 = scmp.eq.s32.totalorder %s25, 1
      %p64 = por %p62, %p63
      %p65 = scmp.ne.s32.totalorder %s56, %s57
      %p66 = scmp.eq.s32.totalorder %s25, 0
      %p67 = por %p65, %p66
      %p68 = scmp.ne.s32.totalorder %s56, %s57
      %p69 = scmp.eq.s32.totalorder %s26, 1
      %p70 = por %p68, %p69
      %p72 = scmp.ne.s32.totalorder %s57, %s71
      %p73 = scmp.eq.s32.totalorder %s26, 0
      %p74 = por %p72, %p73
      %s76 = sadd.s32 %s75, 1
      %p79 = scmp.eq.s32.totalorder %s20, 1
      %p80 = scmp.ne.s32.totalorder %s75, %s77
      %p81 = scmp.eq.s32.totalorder %s20, 0
      %p82 = por %p80, %p81
      %p83 = scmp.ne.s32.totalorder %s75, %s77
      %p84 = scmp.eq.s32.totalorder %s25, 1
      %p85 = por %p83, %p84
      %p86 = scmp.ne.s32.totalorder %s77, %s78
      %p87 = scmp.eq.s32.totalorder %s25, 0
      %p88 = por %p86, %p87
      %p89 = scmp.ne.s32.totalorder %s77, %s78
      %p90 = scmp.eq.s32.totalorder %s26, 1
      %p91 = por %p89, %p90
      %p93 = scmp.ne.s32.totalorder %s78, %s92
      %p94 = scmp.eq.s32.totalorder %s26, 0
      %p95 = por %p93, %p94
      %s96 = ssub.s32 %s20, %s27
      %p97 = scmp.eq.s32.totalorder %s96, 0
      %s99 = sadd.s32 %s98, 1
      %s100 = scalar_select %p97, %s98, %s99
      %p103 = pneg %p97
      %p104 = scmp.eq.s32.totalorder %s20, 1
      %p105 = por %p103, %p104
      %p106 = scmp.ne.s32.totalorder %s98, %s101
      %p107 = scmp.eq.s32.totalorder %s20, 0
      %p108 = por %p106, %p107
      %p109 = scmp.ne.s32.totalorder %s98, %s101
      %p110 = scmp.eq.s32.totalorder %s25, 1
      %p111 = por %p109, %p110
      %p112 = scmp.ne.s32.totalorder %s101, %s102
      %p113 = scmp.eq.s32.totalorder %s25, 0
      %p114 = por %p112, %p113
      %p115 = scmp.ne.s32.totalorder %s101, %s102
      %p116 = scmp.eq.s32.totalorder %s26, 1
      %p117 = por %p115, %p116
      %p119 = scmp.ne.s32.totalorder %s102, %s118
      %p120 = scmp.eq.s32.totalorder %s26, 0
      %p121 = por %p119, %p120
      %s122 = ssub.s32 %s20, %s27
      %p123 = scmp.eq.s32.totalorder %s122, 0
      %s125 = sadd.s32 %s124, 1
      %s126 = scalar_select %p123, %s124, %s125
      %p129 = pneg %p123
      %p130 = scmp.eq.s32.totalorder %s20, 1
      %p131 = por %p129, %p130
      %p132 = scmp.ne.s32.totalorder %s124, %s127
      %p133 = scmp.eq.s32.totalorder %s20, 0
      %p134 = por %p132, %p133
      %p135 = scmp.ne.s32.totalorder %s124, %s127
      %p136 = scmp.eq.s32.totalorder %s25, 1
      %p137 = por %p135, %p136
      %p138 = scmp.ne.s32.totalorder %s127, %s128
      %p139 = scmp.eq.s32.totalorder %s25, 0
      %p140 = por %p138, %p139
      %p141 = scmp.ne.s32.totalorder %s127, %s128
      %p142 = scmp.eq.s32.totalorder %s26, 1
      %p143 = por %p141, %p142
      %p145 = scmp.ne.s32.totalorder %s128, %s144
      %p146 = scmp.eq.s32.totalorder %s26, 0
      %p147 = por %p145, %p146
      %p148 = scmp.le.s32.totalorder 1, %s20
      %p149 = scmp.lt.s32.totalorder %s20, 3
      %p150 = pnand %p148, %p149
      %p151 = pneg %p150
      // Predicated region
      $region9: #{tpu_custom_call.1} parent=5 // pred_check
        _
      $region10: #{tpu_custom_call.1} parent=5 // pred_check_branch
        %153 = sbr.rel (%p150) target = $region12
      $region11: #{tpu_custom_call.1} parent=5 // pred_region
        %s154 = ssub.s32 %s20, 1
        // Predicated region
        $region13: #{tpu_custom_call.1} parent=11 // pred_check
          %p155 = pneg %p67
        $region14: #{tpu_custom_call.1} parent=11 // pred_check_branch
          %157 = sbr.rel (%p155) target = $region16
        $region15: #{tpu_custom_call.1} parent=11 // pred_region
          %159 = vsyncadd [#allocation6], 0
          %s160 = sshll.u32 %s1, 4
          %s161 = int_to_ptr.hbm [resolvable:$true] %s160
          %s162 = sshll.u32 [#allocation5], 4
          %s163 = int_to_ptr.vmem [resolvable:$true] %s162
          %168 = dma.hbm_to_vmem [thread:$0]  %s161, 4096, %s163, [#allocation6], 128, 128, 8
        $region16: #{tpu_custom_call.1} parent=11 // pred_fallthru
          _
        // Predicated region
        $region17: #{tpu_custom_call.1} parent=11 // pred_check
          %p169 = pneg %p88
        $region18: #{tpu_custom_call.1} parent=11 // pred_check_branch
          %171 = sbr.rel (%p169) target = $region20
        $region19: #{tpu_custom_call.1} parent=11 // pred_region
          %173 = vsyncadd [#allocation6], 0
          %s175 = sshll.u32 %s2, 4
          %s176 = int_to_ptr.hbm [resolvable:$true] %s175
          %s177 = sshll.u32 [#allocation7], 4
          %s178 = int_to_ptr.vmem [resolvable:$true] %s177
          %180 = dma.hbm_to_vmem [thread:$0]  %s176, 64, %s178, [#allocation6]
        $region20: #{tpu_custom_call.1} parent=11 // pred_fallthru
          _
      $region12: #{tpu_custom_call.1} parent=5 // pred_fallthru
        _
      %p181 = scmp.lt.s32.totalorder %s20, 2
      // Predicated region
      $region21: #{tpu_custom_call.1} parent=5 // pred_check
        %p182 = pneg %p181
      $region22: #{tpu_custom_call.1} parent=5 // pred_check_branch
        %184 = sbr.rel (%p182) target = $region24
      $region23: #{tpu_custom_call.1} parent=5 // pred_region
        // Predicated region
        $region25: #{tpu_custom_call.1} parent=23 // pred_check
          %p185 = pneg %p40
        $region26: #{tpu_custom_call.1} parent=23 // pred_check_branch
          %187 = sbr.rel (%p185) target = $region28
        $region27: #{tpu_custom_call.1} parent=23 // pred_region
          %s188 = sand.u32 %s30, 1
          %s189 = scalar_lea.sflag [#allocation3], %s188
          %s190 = sand.u32 %s30, 1
          %s191 = smul.addr %s190, 32
          %s192 = scalar_lea.vmem [#allocation2], %s191
          %s193 = smul.u32 2, %s20
          %195 = vsyncadd %s189, 0
          %s196 = smul.addr %s193, 2
          %s197 = smul.addr %s196, 8
          %s198 = scalar_lea.hbm %s0, %s197
          %s199 = sshll.u32 %s198, 4
          %s200 = int_to_ptr.hbm [resolvable:$true] %s199
          %s201 = sshll.u32 %s192, 4
          %s202 = int_to_ptr.vmem [resolvable:$true] %s201
          %207 = dma.hbm_to_vmem [thread:$0]  %s200, 512, %s202, %s189, 256, 256, 16
        $region28: #{tpu_custom_call.1} parent=23 // pred_fallthru
          _
        // Predicated region
        $region29: #{tpu_custom_call.1} parent=23 // pred_check
          %p208 = pneg %p108
        $region30: #{tpu_custom_call.1} parent=23 // pred_check_branch
          %210 = sbr.rel (%p208) target = $region32
        $region31: #{tpu_custom_call.1} parent=23 // pred_region
          %s211 = sand.u32 %s98, 1
          %s212 = scalar_lea.sflag [#allocation9], %s211
          %s213 = sand.u32 %s98, 1
          %s214 = smul.addr %s213, 16
          %s215 = scalar_lea.vmem [#allocation8], %s214
          %s216 = smul.u32 2, %s20
          %218 = vsyncadd %s212, 0
          %s219 = smul.addr %s216, 8
          %s220 = scalar_lea.hbm %s3, %s219
          %s221 = sshll.u32 %s220, 4
          %s222 = int_to_ptr.hbm [resolvable:$true] %s221
          %s223 = sshll.u32 %s215, 4
          %s224 = int_to_ptr.vmem [resolvable:$true] %s223
          %229 = dma.hbm_to_vmem [thread:$0]  %s222, 256, %s224, %s212, 128, 128, 8
        $region32: #{tpu_custom_call.1} parent=23 // pred_fallthru
          _
      $region24: #{tpu_custom_call.1} parent=5 // pred_fallthru
        _
      %p230 = scmp.le.s32.totalorder 1, %s20
      %p231 = scmp.lt.s32.totalorder %s20, 3
      %p232 = pnand %p230, %p231
      %p233 = pneg %p232
      // Predicated region
      $region33: #{tpu_custom_call.1} parent=5 // pred_check
        _
      $region34: #{tpu_custom_call.1} parent=5 // pred_check_branch
        %235 = sbr.rel (%p232) target = $region36
      $region35: #{tpu_custom_call.1} parent=5 // pred_region
        %s236 = ssub.s32 %s20, 1
        %s237 = sand.u32 %s33, 1
        %s238 = scalar_lea.sflag [#allocation3], %s237
        %s239 = sand.u32 %s33, 1
        %s240 = smul.addr %s239, 32
        %s241 = scalar_lea.vmem [#allocation2], %s240
        // Predicated region
        $region37: #{tpu_custom_call.1} parent=35 // pred_check
          %p242 = pneg %p46
        $region38: #{tpu_custom_call.1} parent=35 // pred_check_branch
          %244 = sbr.rel (%p242) target = $region40
        $region39: #{tpu_custom_call.1} parent=35 // pred_region
          %246 = dma.done %s238, 512
        $region40: #{tpu_custom_call.1} parent=35 // pred_fallthru
          _
        // Predicated region
        $region41: #{tpu_custom_call.1} parent=35 // pred_check
          %p247 = pneg %p67
        $region42: #{tpu_custom_call.1} parent=35 // pred_check_branch
          %249 = sbr.rel (%p247) target = $region44
        $region43: #{tpu_custom_call.1} parent=35 // pred_region
          %251 = dma.done [#allocation6], 4096
        $region44: #{tpu_custom_call.1} parent=35 // pred_fallthru
          _
        // Predicated region
        $region45: #{tpu_custom_call.1} parent=35 // pred_check
          %p252 = pneg %p88
        $region46: #{tpu_custom_call.1} parent=35 // pred_check_branch
          %254 = sbr.rel (%p252) target = $region48
        $region47: #{tpu_custom_call.1} parent=35 // pred_region
          %256 = dma.done [#allocation6], 64
        $region48: #{tpu_custom_call.1} parent=35 // pred_fallthru
          _
        %s257 = sand.u32 %s101, 1
        %s258 = scalar_lea.sflag [#allocation9], %s257
        %s259 = sand.u32 %s101, 1
        %s260 = smul.addr %s259, 16
        %s261 = scalar_lea.vmem [#allocation8], %s260
        // Predicated region
        $region49: #{tpu_custom_call.1} parent=35 // pred_check
          %p262 = pneg %p114
        $region50: #{tpu_custom_call.1} parent=35 // pred_check_branch
          %264 = sbr.rel (%p262) target = $region52
        $region51: #{tpu_custom_call.1} parent=35 // pred_region
          %266 = dma.done %s258, 256
        $region52: #{tpu_custom_call.1} parent=35 // pred_fallthru
          _
        %s267 = sand.u32 %s33, 1
        %s268 = scalar_lea.sflag [#allocation3], %s267
        %s269 = sand.u32 %s33, 1
        %s270 = smul.addr %s269, 32
        %s271 = scalar_lea.vmem [#allocation2], %s270
        %p272 = pneg %p46
        %p273 = pneg %p43
        %p274 = pneg %p67
        %p275 = pneg %p64
        %p276 = pneg %p88
        %p277 = pneg %p85
        %s278 = sand.u32 %s101, 1
        %s279 = scalar_lea.sflag [#allocation9], %s278
        %s280 = sand.u32 %s101, 1
        %s281 = smul.addr %s280, 16
        %s282 = scalar_lea.vmem [#allocation8], %s281
        %p283 = pneg %p114
        %p284 = pneg %p111
        %p285 = pneg %p140
        %p286 = pneg %p137
        %s287 = sand.u32 %s127, 1
        %s288 = scalar_lea.sflag [#allocation4], %s287
        %s289 = sand.u32 %s127, 1
        %s290 = smul.addr %s289, 16
        %s291 = scalar_lea.vmem [#allocation10], %s290
        %s292 = smul.u32 2, %s25
        %s293 = smul.u32 2, %s25
        %s294 = smul.u32 2, %s25
        %v295 = vld [vmem:[#allocation5] sm:$0xff]
        %v296 = vld [vmem:[#allocation5 + $0x8] sm:$0xff]
        %v297 = vld [vmem:[#allocation5 + $0x10] sm:$0xff]
        %v298 = vld [vmem:[#allocation5 + $0x18] sm:$0xff]
        %v299 = vld [vmem:[#allocation5 + $0x20] sm:$0xff]
        %v300 = vld [vmem:[#allocation5 + $0x28] sm:$0xff]
        %v301 = vld [vmem:[#allocation5 + $0x30] sm:$0xff]
        %v302 = vld [vmem:[#allocation5 + $0x38] sm:$0xff]
        %v303 = vld [vmem:[#allocation5 + $0x40] sm:$0xff]
        %v304 = vld [vmem:[#allocation5 + $0x48] sm:$0xff]
        %v305 = vld [vmem:[#allocation5 + $0x50] sm:$0xff]
        %v306 = vld [vmem:[#allocation5 + $0x58] sm:$0xff]
        %v307 = vld [vmem:[#allocation5 + $0x60] sm:$0xff]
        %v308 = vld [vmem:[#allocation5 + $0x68] sm:$0xff]
        %v309 = vld [vmem:[#allocation5 + $0x70] sm:$0xff]
        %v310 = vld [vmem:[#allocation5 + $0x78] sm:$0xff]
        %v311 = vld [vmem:[#allocation5 + $0x80] sm:$0xff]
        %v312 = vld [vmem:[#allocation5 + $0x88] sm:$0xff]
        %v313 = vld [vmem:[#allocation5 + $0x90] sm:$0xff]
        %v314 = vld [vmem:[#allocation5 + $0x98] sm:$0xff]
        %v315 = vld [vmem:[#allocation5 + $0xa0] sm:$0xff]
        %v316 = vld [vmem:[#allocation5 + $0xa8] sm:$0xff]
        %v317 = vld [vmem:[#allocation5 + $0xb0] sm:$0xff]
        %v318 = vld [vmem:[#allocation5 + $0xb8] sm:$0xff]
        %v319 = vld [vmem:[#allocation5 + $0xc0] sm:$0xff]
        %v320 = vld [vmem:[#allocation5 + $0xc8] sm:$0xff]
        %v321 = vld [vmem:[#allocation5 + $0xd0] sm:$0xff]
        %v322 = vld [vmem:[#allocation5 + $0xd8] sm:$0xff]
        %v323 = vld [vmem:[#allocation5 + $0xe0] sm:$0xff]
        %v324 = vld [vmem:[#allocation5 + $0xe8] sm:$0xff]
        %v325 = vld [vmem:[#allocation5 + $0xf0] sm:$0xff]
        %v326 = vld [vmem:[#allocation5 + $0xf8] sm:$0xff]
        %v327 = vld [vmem:[%s241] sm:$0xff]
        %v328 = vld [vmem:[%s241 + $0x8] sm:$0xff]
        %v329 = vld [vmem:[%s241 + $0x10] sm:$0xff]
        %v330 = vld [vmem:[%s241 + $0x18] sm:$0xff]
        %v331 = vld [vmem:[#allocation7] sm:$0x1]
        %v332 = vperm.slane %v331, 0
        %333 = vmatpush.msra.mxu0 %v310
        %334 = vmatpush.msra.mxu0 %v309
        %335 = vmatpush.msra.mxu0 %v308
        %336 = vmatpush.msra.mxu0 %v307
        %337 = vmatpush.msra.mxu0 %v306
        %338 = vmatpush.msra.mxu0 %v305
        %339 = vmatpush.msra.mxu0 %v304
        %340 = vmatpush.msra.mxu0 %v303
        %341 = vmatpush.msra.mxu0 %v302
        %342 = vmatpush.msra.mxu0 %v301
        %343 = vmatpush.msra.mxu0 %v300
        %344 = vmatpush.msra.mxu0 %v299
        %345 = vmatpush.msra.mxu0 %v298
        %346 = vmatpush.msra.mxu0 %v297
        %347 = vmatpush.msra.mxu0 %v296
        %348 = vmatpush.msra.mxu0 %v295
        %349 = vmatmul.f32.gmra.mxu0 %v327
        %v350 = vpop.f32.mrf.mxu0
        %v351 = vadd.f32 %v332, %v350
        %352 = vmatmul.f32.gmra.mxu0 %v329
        %v353 = vpop.f32.mrf.mxu0
        %v354 = vadd.f32 %v332, %v353
        %355 = vdwg.mxu0
        %356 = vmatpush.msra.mxu0 %v326
        %357 = vmatpush.msra.mxu0 %v325
        %358 = vmatpush.msra.mxu0 %v324
        %359 = vmatpush.msra.mxu0 %v323
        %360 = vmatpush.msra.mxu0 %v322
        %361 = vmatpush.msra.mxu0 %v321
        %362 = vmatpush.msra.mxu0 %v320
        %363 = vmatpush.msra.mxu0 %v319
        %364 = vmatpush.msra.mxu0 %v318
        %365 = vmatpush.msra.mxu0 %v317
        %366 = vmatpush.msra.mxu0 %v316
        %367 = vmatpush.msra.mxu0 %v315
        %368 = vmatpush.msra.mxu0 %v314
        %369 = vmatpush.msra.mxu0 %v313
        %370 = vmatpush.msra.mxu0 %v312
        %371 = vmatpush.msra.mxu0 %v311
        %372 = vmatmul.f32.gmra.mxu0 %v328
        %v373 = vpop.f32.mrf.mxu0
        %v374 = vadd.f32 %v351, %v373
        %375 = vmatmul.f32.gmra.mxu0 %v330
        %v376 = vpop.f32.mrf.mxu0
        %v377 = vadd.f32 %v354, %v376
        %378 = vdwg.mxu0
        %v379 = vmax.f32 %v374, 0.0
        %v380 = vmax.f32 %v377, 0.0
        %v381 = vld [vmem:[#allocation7 + $0x1] sm:$0x1]
        %v382 = vperm.slane %v381, 0
        %v383 = vmul.f32 %v379, %v382
        %v384 = vmul.f32 %v380, %v382
        %v385 = vld [vmem:[%s261] sm:$0xff]
        %v386 = vld [vmem:[%s261 + $0x8] sm:$0xff]
        %v387 = vld [vmem:[#allocation7 + $0x3] sm:$0x1]
        %v388 = vperm.slane %v387, 0
        %v389 = vmul.f32 %v385, %v388
        %v390 = vmul.f32 %v386, %v388
        %v391 = vadd.f32 %v383, %v389
        %v392 = vadd.f32 %v384, %v390
        %v393 = vld [vmem:[#allocation7 + $0x2] sm:$0x1]
        %v394 = vperm.slane %v393, 0
        %v395 = vadd.f32 %v391, %v394
        %v396 = vadd.f32 %v392, %v394
        %397 = vst [vmem:[%s291] sm:$0xff] %v395
        %398 = vst [vmem:[%s291 + $0x8] sm:$0xff] %v396
        %s399 = sand.u32 %s127, 1
        %s400 = scalar_lea.sflag [#allocation4], %s399
        %s401 = sand.u32 %s127, 1
        %s402 = smul.addr %s401, 16
        %s403 = scalar_lea.vmem [#allocation10], %s402
        // Predicated region
        $region53: #{tpu_custom_call.1} parent=35 // pred_check
          %p404 = pneg %p137
        $region54: #{tpu_custom_call.1} parent=35 // pred_check_branch
          %406 = sbr.rel (%p404) target = $region56
        $region55: #{tpu_custom_call.1} parent=35 // pred_region
          %s407 = smul.u32 2, %s25
          %409 = vsyncadd %s400, 0
          %s410 = smul.addr %s407, 8
          %s411 = scalar_lea.hbm %s4, %s410
          %s412 = sshll.u32 %s403, 4
          %s413 = int_to_ptr.vmem [resolvable:$true] %s412
          %s414 = sshll.u32 %s411, 4
          %s415 = int_to_ptr.hbm [resolvable:$true] %s414
          %420 = dma.vmem_to_hbm [thread:$0]  %s413, 256, %s415, %s400, 128, 128, 8
        $region56: #{tpu_custom_call.1} parent=35 // pred_fallthru
          _
      $region36: #{tpu_custom_call.1} parent=5 // pred_fallthru
        _
      %p421 = scmp.le.s32.totalorder 2, %s20
      // Predicated region
      $region57: #{tpu_custom_call.1} parent=5 // pred_check
        %p422 = pneg %p421
      $region58: #{tpu_custom_call.1} parent=5 // pred_check_branch
        %424 = sbr.rel (%p422) target = $region60
      $region59: #{tpu_custom_call.1} parent=5 // pred_region
        %s425 = ssub.s32 %s20, 2
        // Predicated region
        $region61: #{tpu_custom_call.1} parent=59 // pred_check
          %p426 = pneg %p143
        $region62: #{tpu_custom_call.1} parent=59 // pred_check_branch
          %428 = sbr.rel (%p426) target = $region64
        $region63: #{tpu_custom_call.1} parent=59 // pred_region
          %s429 = sand.u32 %s128, 1
          %s430 = scalar_lea.sflag [#allocation4], %s429
          %s431 = sand.u32 %s128, 1
          %s432 = smul.addr %s431, 16
          %s433 = scalar_lea.vmem [#allocation10], %s432
          %435 = dma.done %s430, 256
        $region64: #{tpu_custom_call.1} parent=59 // pred_fallthru
          _
      $region60: #{tpu_custom_call.1} parent=5 // pred_fallthru
        _
    $region6: #{tpu_custom_call.1} parent=1 // loop_footer
      %s24 = sadd.s32 1, %s20
    $region7: #{tpu_custom_call.1} parent=1 // loop_footer_branch
      %19 = sbr.rel target = $region3
    $region8: #{tpu_custom_call.1} parent=1 // loop_exit
      _
    %436 = vsyncpa [#allocation3], 1
    %s437 = scalar_lea.sflag [#allocation3], 1
    %438 = vsyncpa %s437, 1
    %439 = vsyncpa [#allocation6], 1
    %440 = vsyncpa [#allocation9], 1
    %s441 = scalar_lea.sflag [#allocation9], 1
    %442 = vsyncpa %s441, 1
    %443 = vsyncpa [#allocation4], 1
    %s444 = scalar_lea.sflag [#allocation4], 1
    %445 = vsyncpa %s444, 1

</llo_original>
